<compile_context>
chip_gen: v7x
topology: tpu7x:2x2x1
jax: 0.10.0
libtpu: 0.0.40
codegen_flags: <defaults>
</compile_context>

<pallas_src>
import jax
import jax.numpy as jnp
from jax.experimental import pallas as pl
from jax.experimental.pallas import tpu as pltpu


def _round_up(x, m):
    return (x + m - 1) // m * m


# ----------------------------------------------------------------------------
# Hardware probing (best-effort, fully guarded)
# ----------------------------------------------------------------------------
def _vmem_capacity_bytes():
    try:
        return int(pltpu.get_tpu_info().vmem_capacity_bytes)
    except Exception:
        return 64 * 1024 * 1024          # conservative fallback (v7x per-TC size)


def _has_two_tensorcores():
    try:
        kind = jax.devices()[0].device_kind.lower()
        return "v7" in kind              # v7x: 2 TensorCores per chip
    except Exception:
        return False


# ----------------------------------------------------------------------------
# Pallas kernel: out = w_scaled @ x + shift   (1x1 conv + folded BatchNorm)
# ----------------------------------------------------------------------------
def _conv1x1_bn_kernel(x_ref, w_ref, shift_ref, o_ref):
    # (Cout, Cin) @ (Cin, THW) on the MXU; BN scale is pre-folded into w.
    acc = jnp.dot(w_ref[...], x_ref[...].astype(jnp.bfloat16),
                  preferred_element_type=jnp.float32)
    o_ref[...] = (acc + shift_ref[...]).astype(o_ref.dtype)


def _pick_hw_tile(HW, Cin, Cout, n_batch, vmem_budget, two_tc):
    """Lane-dim (HW) tile: full width when it fits, else a 128-multiple.

    On v7x with a single batch, split HW into ~256-aligned balanced halves so
    both TensorCores get work; on single-TC chips never split just for the
    sake of it (the grid is a sequential loop there).
    """
    per_col = 2 * (Cin * 4 + Cout * 4)           # double-buffered f32 x + f32 out per column
    max_cols = max(128, (vmem_budget // per_col) // 128 * 128)
    want_split = two_tc and n_batch < 2 and HW >= 256
    if HW <= max_cols and not want_split:
        return HW                                # one full-width block
    t = min(HW, max_cols)
    if want_split:
        t = min(t, _round_up(pl.cdiv(HW, 2), 256))
    return max(128, (t // 128) * 128)


def conv1x1_bn_nchw(x3d, w_s, shift, thw, vmem_limit_bytes):
    """x3d:(N,Cin,HW), w_s:(Cout,Cin) bf16 (scale folded), shift:(Cout,1) f32."""
    N, Cin, HW = x3d.shape
    Cout = w_s.shape[0]
    grid = (N, pl.cdiv(HW, thw))

    return pl.pallas_call(
        _conv1x1_bn_kernel,
        out_shape=jax.ShapeDtypeStruct((N, Cout, HW), jnp.float32),
        grid_spec=pltpu.PrefetchScalarGridSpec(
            num_scalar_prefetch=0,
            grid=grid,
            in_specs=[
                pl.BlockSpec((None, Cin, thw), lambda n, j: (n, 0, j)),  # activations
                pl.BlockSpec((Cout, Cin), lambda n, j: (0, 0)),          # scaled weight (resident)
                pl.BlockSpec((Cout, 1), lambda n, j: (0, 0)),            # BN shift
            ],
            out_specs=pl.BlockSpec((None, Cout, thw), lambda n, j: (n, 0, j)),
        ),
        compiler_params=pltpu.CompilerParams(
            dimension_semantics=("parallel", "parallel"),
            vmem_limit_bytes=int(vmem_limit_bytes),
        ),
    )(x3d, w_s, shift)


# ----------------------------------------------------------------------------
# Parameters (deterministic synthetic init mirroring the module shapes)
# ----------------------------------------------------------------------------
def init_resdowns_params(key, inplane, outplane, eps=1e-5):
    kw, kg, kb, km, kv = jax.random.split(key, 5)
    bound = 1.0 / (inplane ** 0.5)     # Conv2d default kaiming_uniform_(a=sqrt(5))
    w = jax.random.uniform(kw, (outplane, inplane), jnp.float32, -bound, bound)
    gamma = jax.random.uniform(kg, (outplane,), jnp.float32, 0.5, 1.5)
    beta = jax.random.uniform(kb, (outplane,), jnp.float32, -0.5, 0.5)
    mean = 0.1 * jax.random.normal(km, (outplane,), jnp.float32)
    var = jax.random.uniform(kv, (outplane,), jnp.float32, 0.5, 1.5)
    return {"w": w, "gamma": gamma, "beta": beta, "mean": mean, "var": var,
            "eps": eps}


# ----------------------------------------------------------------------------
# ResDownS.forward factory: folds BN once, returns a jitted forward.
# ----------------------------------------------------------------------------
def make_resdowns(params):
    # --- param prep, hoisted out of the per-call path (done once) ---
    scale = params["gamma"] / jnp.sqrt(params["var"] + params["eps"])
    shift = (params["beta"] - params["mean"] * scale).reshape(-1, 1).astype(jnp.float32)
    w_s = (params["w"] * scale[:, None]).astype(jnp.bfloat16)       # (Cout, Cin)
    w_s, shift = jax.device_put(w_s), jax.device_put(shift)
    Cout = w_s.shape[0]

    # --- generation-aware VMEM sizing (static Python ints) ---
    vmem_cap = _vmem_capacity_bytes()
    two_tc = _has_two_tensorcores()
    budget = min(vmem_cap // 2, 40 * 1024 * 1024)        # tiling budget for x/out tiles
    vmem_limit = max(32 * 1024 * 1024,
                     min(vmem_cap - 8 * 1024 * 1024, budget + 16 * 1024 * 1024))

    @jax.jit
    def forward(x):
        """x: (N, Cin, H, W) NCHW -> (N, Cout, H', W') NCHW (cropped if width < 20)."""
        N, Cin, H, W = x.shape
        # The crop commutes with a 1x1 conv + pointwise BN (spatial-size
        # preserving), so apply it to the input: identical retained values.
        if W < 20:                     # mirrors `if x.size(3) < 20`
            x = x[:, :, 4:-4, 4:-4]
            H, W = H - 8, W - 8
        HW = H * W
        x3d = x.reshape(N, Cin, HW)    # contiguous view: no transpose, no copy
        thw = _pick_hw_tile(HW, Cin, Cout, N, budget, two_tc)
        out = conv1x1_bn_nchw(x3d, w_s, shift, thw, vmem_limit)     # (N, Cout, HW)
        return out.reshape(N, Cout, H, W)                           # free reshape

    return forward


# ----------------------------------------------------------------------------
# Pure-JAX reference (f32) for a sanity check
# ----------------------------------------------------------------------------
def resdowns_reference(params, x):
    scale = params["gamma"] / jnp.sqrt(params["var"] + params["eps"])
    shift = params["beta"] - params["mean"] * scale
    y = jnp.einsum("nchw,oc->nohw", x, params["w"])
    y = y * scale[None, :, None, None] + shift[None, :, None, None]
    if y.shape[3] < 20:
        y = y[:, :, 4:-4, 4:-4]
    return y


if __name__ == "__main__":
    key = jax.random.PRNGKey(0)
    kp, k1, k2 = jax.random.split(key, 3)
    inplane, outplane = 64, 32
    params = init_resdowns_params(kp, inplane, outplane)
    forward = make_resdowns(params)

    x_small = jax.random.normal(k1, (2, inplane, 15, 15), jnp.float32)  # crop path (15 -> 7)
    x_large = jax.random.normal(k2, (2, inplane, 24, 24), jnp.float32)  # no-crop path

    cases = ((x_small, (2, outplane, 7, 7)), (x_large, (2, outplane, 24, 24)))
    for x, want_shape in cases:
        out = jax.block_until_ready(forward(x))
        assert out.shape == want_shape and out.dtype == jnp.float32, (out.shape, out.dtype)
        ref = resdowns_reference(params, x)
        err = float(jnp.max(jnp.abs(out - ref)))
        assert err < 5e-2, f"max |err| = {err}"  # bf16 MXU operands, f32 accumulate

    print("KERNEL_OK")
</pallas_src>

<mosaic_0001>
module attributes {stable_mosaic.version = 11 : i64} {
  func.func @_conv1x1_bn_kernel(%arg0: i32, %arg1: i32, %arg2: memref<1x64x49xf32, #tpu.memory_space<vmem>>, %arg3: memref<32x64xbf16, #tpu.memory_space<vmem>>, %arg4: memref<32x1xf32, #tpu.memory_space<vmem>>, %arg5: memref<1x32x49xf32, #tpu.memory_space<vmem>>) attributes {dimension_semantics = [#tpu.dimension_semantics<parallel>, #tpu.dimension_semantics<parallel>], iteration_bounds = array<i64: 2, 1>, scalar_prefetch = 0 : i64, scratch_operands = 0 : i64, tpu.core_type = #tpu.core_type<tc>, window_params = [{transform_indices = @transform_0, window_bounds = array<i64: 1, 64, 49>}, {pipeline_mode = #tpu.pipeline_mode<synchronous>, transform_indices = @transform_1, window_bounds = array<i64: 32, 64>}, {pipeline_mode = #tpu.pipeline_mode<synchronous>, transform_indices = @transform_2, window_bounds = array<i64: 32, 1>}, {transform_indices = @transform_3, window_bounds = array<i64: 1, 32, 49>}]} {
    %c0 = arith.constant 0 : index
    %c0_0 = arith.constant 0 : index
    %0 = vector.load %arg3[%c0, %c0_0] : memref<32x64xbf16, #tpu.memory_space<vmem>>, vector<32x64xbf16>
    %c0_1 = arith.constant 0 : index
    %c0_2 = arith.constant 0 : index
    %c0_3 = arith.constant 0 : index
    %1 = vector.load %arg2[%c0_1, %c0_2, %c0_3] : memref<1x64x49xf32, #tpu.memory_space<vmem>>, vector<1x64x49xf32>
    %2 = vector.shape_cast %1 : vector<1x64x49xf32> to vector<64x49xf32>
    %3 = arith.truncf %2 : vector<64x49xf32> to vector<64x49xbf16>
    %cst = arith.constant dense<0.000000e+00> : vector<32x49xf32>
    %4 = tpu.matmul %0, %3, %cst {dimension_numbers = #tpu.dot_dimension_numbers<[1], [0], [0], [1], [0, 0, 1, 1], [], []>} : vector<32x64xbf16>, vector<64x49xbf16>, vector<32x49xf32> -> vector<32x49xf32>
    %c0_4 = arith.constant 0 : index
    %c0_5 = arith.constant 0 : index
    %5 = vector.load %arg4[%c0_4, %c0_5] : memref<32x1xf32, #tpu.memory_space<vmem>>, vector<32x1xf32>
    %6 = vector.broadcast %5 : vector<32x1xf32> to vector<32x49xf32>
    %7 = arith.addf %4, %6 : vector<32x49xf32>
    %c0_6 = arith.constant 0 : index
    %c0_7 = arith.constant 0 : index
    %c0_8 = arith.constant 0 : index
    %8 = vector.load %arg5[%c0_6, %c0_7, %c0_8] : memref<1x32x49xf32, #tpu.memory_space<vmem>>, vector<1x32x49xf32>
    %9 = vector.shape_cast %8 : vector<1x32x49xf32> to vector<32x49xf32>
    %10 = vector.shape_cast %7 : vector<32x49xf32> to vector<1x32x49xf32>
    tpu.vector_store %arg5[%c0_6, %c0_7, %c0_8], %10 {strides = array<i32>} : memref<1x32x49xf32, #tpu.memory_space<vmem>>, vector<1x32x49xf32>,
    return
  }
  func.func @transform_0(%arg0: i32, %arg1: i32) -> (i32, i32, i32) {
    %c0_i32 = arith.constant 0 : i32
    %c0_i32_0 = arith.constant 0 : i32
    return %arg0, %c0_i32, %arg1 : i32, i32, i32
  }
  func.func @transform_1(%arg0: i32, %arg1: i32) -> (i32, i32) {
    %c0_i32 = arith.constant 0 : i32
    %c0_i32_0 = arith.constant 0 : i32
    %c0_i32_1 = arith.constant 0 : i32
    return %c0_i32, %c0_i32_0 : i32, i32
  }
  func.func @transform_2(%arg0: i32, %arg1: i32) -> (i32, i32) {
    %c0_i32 = arith.constant 0 : i32
    %c0_i32_0 = arith.constant 0 : i32
    %c0_i32_1 = arith.constant 0 : i32
    return %c0_i32, %c0_i32_0 : i32, i32
  }
  func.func @transform_3(%arg0: i32, %arg1: i32) -> (i32, i32, i32) {
    %c0_i32 = arith.constant 0 : i32
    %c0_i32_0 = arith.constant 0 : i32
    return %arg0, %c0_i32, %arg1 : i32, i32, i32
  }
}

</mosaic_0001>

<llo_original>
// kernel: forward.1
$region0: #{forward.1}
  #allocation0 [shape = 'u32[]', space=smem, size = 0x4, offset = 0x4, fixed_abs, tag = 'smem constant byte address 0x4 - core index']
  #allocation1 [shape = 'u32[144,128]{1,0:T(1,128)}', space=vmem, size = 0x12000, scoped, tag = 'internal scratch']
  %s0 = inlined_call_operand.vmem [shape: f32[2,64,49], index: 0, kind: input, shape index: {}]
  %s1 = inlined_call_operand.vmem [shape: bf16[32,64], index: 1, kind: input, shape index: {}]
  %s2 = inlined_call_operand.vmem [shape: f32[32,1], index: 2, kind: input, shape index: {}]
  %s3 = inlined_call_operand.vmem [shape: f32[2,32,49], index: 3, kind: output, shape index: {}]
  %s4 = sld [smem:[#allocation0]]
  $region45: #{forward.1} parent=0
    _
  %s6 = ssub.s32 1, %s4
  %s7 = scalar_select 0, %s6, %s4
  loop: start=0, step=1, limit=4
  $region2: #{forward.1} parent=0 // loop_pre_header
    _
  $region3: #{forward.1} parent=0 // loop_header
    %s9 = sphi 0, %s13
    %p10 = scmp.ge.s32.totalorder %s9, 4
    %s16 = sphi 0, %s28
    %s17 = sphi 0, %s24
    %s18 = sphi 0, %s16
    %s19 = sphi 0, %s17
    %s20 = sphi 0, %s18
    %s21 = sphi 0, %s19
    %s33 = sphi 0, %s35
    %s36 = sphi 0, %s33
    %s37 = sphi 0, %s36
    %s53 = sphi 0, %s37
    %s57 = sphi 0, %s57
    %s59 = sphi 0, %s57
    %s60 = sphi 0, %s59
    %s74 = sphi 0, %s60
    %s78 = sphi 0, %s78
    %s80 = sphi 0, %s78
    %s81 = sphi 0, %s80
    %s95 = sphi 0, %s81
    %s103 = sphi 0, %s105
    %s106 = sphi 0, %s103
    %s107 = sphi 0, %s106
    %s123 = sphi 0, %s107
  $region4: #{forward.1} parent=0 // loop_header_branch
    %12 = sbr.rel (%p10) target = $region8
  $region5: #{forward.1} parent=0 // loop_body
    %s14 = ssub.s32 %s9, 1
    %s15 = ssub.s32 %s9, 2
    %s22 = sadd.s32 1, %s17
    %p23 = scmp.ge.s32.totalorder %s22, 1
    %s24 = scalar_select %p23, 0, %s22
    %s25 = sadd.s32 1, %s16
    %s26 = scalar_select %p23, %s25, %s16
    %p27 = scmp.ge.s32.totalorder %s26, 2
    %s28 = scalar_select %p27, 0, %s26
    %s29 = ssub.s32 %s16, %s28
    %s30 = ssub.s32 %s17, %s24
    %s31 = sor.u32 %s29, %s30
    %p32 = scmp.eq.s32.totalorder %s31, 0
    %s34 = sadd.s32 %s33, 1
    %s35 = scalar_select %p32, %s33, %s34
    %p38 = pneg %p32
    %p39 = scmp.eq.s32.totalorder %s9, 1
    %p40 = por %p38, %p39
    %p41 = scmp.ne.s32.totalorder %s33, %s36
    %p42 = scmp.eq.s32.totalorder %s9, 0
    %p43 = por %p41, %p42
    %p44 = scmp.ne.s32.totalorder %s33, %s36
    %p45 = scmp.eq.s32.totalorder %s14, 1
    %p46 = por %p44, %p45
    %p47 = scmp.ne.s32.totalorder %s36, %s37
    %p48 = scmp.eq.s32.totalorder %s14, 0
    %p49 = por %p47, %p48
    %p50 = scmp.ne.s32.totalorder %s36, %s37
    %p51 = scmp.eq.s32.totalorder %s15, 1
    %p52 = por %p50, %p51
    %p54 = scmp.ne.s32.totalorder %s37, %s53
    %p55 = scmp.eq.s32.totalorder %s15, 0
    %p56 = por %p54, %p55
    %s58 = sadd.s32 %s57, 1
    %p61 = scmp.eq.s32.totalorder %s9, 1
    %p62 = scmp.ne.s32.totalorder %s57, %s59
    %p63 = scmp.eq.s32.totalorder %s9, 0
    %p64 = por %p62, %p63
    %p65 = scmp.ne.s32.totalorder %s57, %s59
    %p66 = scmp.eq.s32.totalorder %s14, 1
    %p67 = por %p65, %p66
    %p68 = scmp.ne.s32.totalorder %s59, %s60
    %p69 = scmp.eq.s32.totalorder %s14, 0
    %p70 = por %p68, %p69
    %p71 = scmp.ne.s32.totalorder %s59, %s60
    %p72 = scmp.eq.s32.totalorder %s15, 1
    %p73 = por %p71, %p72
    %p75 = scmp.ne.s32.totalorder %s60, %s74
    %p76 = scmp.eq.s32.totalorder %s15, 0
    %p77 = por %p75, %p76
    %s79 = sadd.s32 %s78, 1
    %p82 = scmp.eq.s32.totalorder %s9, 1
    %p83 = scmp.ne.s32.totalorder %s78, %s80
    %p84 = scmp.eq.s32.totalorder %s9, 0
    %p85 = por %p83, %p84
    %p86 = scmp.ne.s32.totalorder %s78, %s80
    %p87 = scmp.eq.s32.totalorder %s14, 1
    %p88 = por %p86, %p87
    %p89 = scmp.ne.s32.totalorder %s80, %s81
    %p90 = scmp.eq.s32.totalorder %s14, 0
    %p91 = por %p89, %p90
    %p92 = scmp.ne.s32.totalorder %s80, %s81
    %p93 = scmp.eq.s32.totalorder %s15, 1
    %p94 = por %p92, %p93
    %p96 = scmp.ne.s32.totalorder %s81, %s95
    %p97 = scmp.eq.s32.totalorder %s15, 0
    %p98 = por %p96, %p97
    %s99 = ssub.s32 %s16, %s28
    %s100 = ssub.s32 %s17, %s24
    %s101 = sor.u32 %s99, %s100
    %p102 = scmp.eq.s32.totalorder %s101, 0
    %s104 = sadd.s32 %s103, 1
    %s105 = scalar_select %p102, %s103, %s104
    %p108 = pneg %p102
    %p109 = scmp.eq.s32.totalorder %s9, 1
    %p110 = por %p108, %p109
    %p111 = scmp.ne.s32.totalorder %s103, %s106
    %p112 = scmp.eq.s32.totalorder %s9, 0
    %p113 = por %p111, %p112
    %p114 = scmp.ne.s32.totalorder %s103, %s106
    %p115 = scmp.eq.s32.totalorder %s14, 1
    %p116 = por %p114, %p115
    %p117 = scmp.ne.s32.totalorder %s106, %s107
    %p118 = scmp.eq.s32.totalorder %s14, 0
    %p119 = por %p117, %p118
    %p120 = scmp.ne.s32.totalorder %s106, %s107
    %p121 = scmp.eq.s32.totalorder %s15, 1
    %p122 = por %p120, %p121
    %p124 = scmp.ne.s32.totalorder %s107, %s123
    %p125 = scmp.eq.s32.totalorder %s15, 0
    %p126 = por %p124, %p125
    %p127 = scmp.le.s32.totalorder 1, %s9
    %p128 = scmp.lt.s32.totalorder %s9, 3
    %p129 = pnand %p127, %p128
    %p130 = pneg %p129
    // Predicated region
    $region9: #{forward.1} parent=5 // pred_check
      _
    $region10: #{forward.1} parent=5 // pred_check_branch
      %132 = sbr.rel (%p129) target = $region12
    $region11: #{forward.1} parent=5 // pred_region
      %s133 = ssub.s32 %s9, 1
      // Predicated region
      $region13: #{forward.1} parent=11 // pred_check
        %p134 = pneg %p70
      $region14: #{forward.1} parent=11 // pred_check_branch
        %136 = sbr.rel (%p134) target = $region16
      $region15: #{forward.1} parent=11 // pred_region
        _
      $region16: #{forward.1} parent=11 // pred_fallthru
        _
      // Predicated region
      $region17: #{forward.1} parent=11 // pred_check
        %p137 = pneg %p91
      $region18: #{forward.1} parent=11 // pred_check_branch
        %139 = sbr.rel (%p137) target = $region20
      $region19: #{forward.1} parent=11 // pred_region
        _
      $region20: #{forward.1} parent=11 // pred_fallthru
        _
    $region12: #{forward.1} parent=5 // pred_fallthru
      _
    %p140 = scmp.lt.s32.totalorder %s9, 2
    // Predicated region
    $region21: #{forward.1} parent=5 // pred_check
      %p141 = pneg %p140
    $region22: #{forward.1} parent=5 // pred_check_branch
      %143 = sbr.rel (%p141) target = $region24
    $region23: #{forward.1} parent=5 // pred_region
      // Predicated region
      $region25: #{forward.1} parent=23 // pred_check
        %p144 = pneg %p43
      $region26: #{forward.1} parent=23 // pred_check_branch
        %146 = sbr.rel (%p144) target = $region28
      $region27: #{forward.1} parent=23 // pred_region
        %p147 = scmp.lt.s32.totalorder %s16, 1
        %s148 = scalar_select %p147, %s16, 1
        %p149 = scmp.lt.s32.totalorder %s17, 0
        %s150 = scalar_select %p149, %s17, 0
        %s151 = smul.addr %s148, 8
        %s152 = sadd.s32 %s150, %s151
        %s153 = smul.addr %s152, 8
        %s154 = scalar_lea.vmem %s0, %s153
      $region28: #{forward.1} parent=23 // pred_fallthru
        _
    $region24: #{forward.1} parent=5 // pred_fallthru
      _
    %p155 = scmp.le.s32.totalorder 1, %s9
    %p156 = scmp.lt.s32.totalorder %s9, 3
    %p157 = pnand %p155, %p156
    %p158 = pneg %p157
    // Predicated region
    $region29: #{forward.1} parent=5 // pred_check
      _
    $region30: #{forward.1} parent=5 // pred_check_branch
      %160 = sbr.rel (%p157) target = $region32
    $region31: #{forward.1} parent=5 // pred_region
      %s161 = ssub.s32 %s9, 1
      %p162 = scmp.lt.s32.totalorder %s18, 1
      %s163 = scalar_select %p162, %s18, 1
      %p164 = scmp.lt.s32.totalorder %s19, 0
      %s165 = scalar_select %p164, %s19, 0
      %s166 = smul.addr %s163, 8
      %s167 = sadd.s32 %s165, %s166
      %s168 = smul.addr %s167, 8
      %s169 = scalar_lea.vmem %s0, %s168
      %p170 = pneg %p49
      %p171 = pneg %p46
      %p172 = pneg %p70
      %p173 = pneg %p67
      %p174 = pneg %p91
      %p175 = pneg %p88
      %p176 = pneg %p119
      %p177 = pneg %p116
      %p178 = scmp.lt.s32.totalorder %s18, 1
      %s179 = scalar_select %p178, %s18, 1
      %p180 = scmp.lt.s32.totalorder %s19, 0
      %s181 = scalar_select %p180, %s19, 0
      %s182 = smul.addr %s179, 4
      %s183 = sadd.s32 %s181, %s182
      %s184 = smul.addr %s183, 8
      %s185 = scalar_lea.vmem %s3, %s184
      %p186 = scmp.lt.s32.totalorder %s18, 1
      %s187 = scalar_select %p186, %s18, 1
      %p188 = scmp.lt.s32.totalorder %s19, 0
      %s189 = scalar_select %p188, %s19, 0
      %s190 = smul.addr %s187, 8
      %s191 = sadd.s32 %s189, %s190
      %s192 = smul.addr %s191, 8
      %s193 = scalar_lea.vmem %s0, %s192
      %p194 = scmp.lt.s32.totalorder %s18, 1
      %s195 = scalar_select %p194, %s18, 1
      %p196 = scmp.lt.s32.totalorder %s19, 0
      %s197 = scalar_select %p196, %s19, 0
      %s198 = smul.addr %s195, 4
      %s199 = sadd.s32 %s197, %s198
      %s200 = smul.addr %s199, 8
      %s201 = scalar_lea.vmem %s3, %s200
      %v203 = vld [vmem:[%s1] sm:$0xf]
      %v204 = vld [vmem:[%s1 + $0x4] sm:$0xf]
      %v205 = vld [vmem:[%s1 + $0x8] sm:$0xf]
      %v206 = vld [vmem:[%s1 + $0xc] sm:$0xf]
      %v207 = vld [vmem:[%s193] sm:$0xff]
      %v208 = vld [vmem:[%s193 + $0x8] sm:$0xff]
      %v209 = vld [vmem:[%s193 + $0x10] sm:$0xff]
      %v210 = vld [vmem:[%s193 + $0x18] sm:$0xff]
      %v211 = vld [vmem:[%s193 + $0x20] sm:$0xff]
      %v212 = vld [vmem:[%s193 + $0x28] sm:$0xff]
      %v213 = vld [vmem:[%s193 + $0x30] sm:$0xff]
      %v214 = vld [vmem:[%s193 + $0x38] sm:$0xff]
      %v215 = vpack.c.bf16 %v208, %v207
      %v216 = vpack.c.bf16 %v210, %v209
      %v217 = vpack.c.bf16 %v212, %v211
      %v218 = vpack.c.bf16 %v214, %v213
      %v219 = vld [vmem:[%s2] sm:$0xff]
      %v220 = vld [vmem:[%s2 + $0x8] sm:$0xff]
      %v221 = vld [vmem:[%s2 + $0x10] sm:$0xff]
      %v222 = vld [vmem:[%s2 + $0x18] sm:$0xff]
      %224 = vset.pattern.permute.xlu0 0
      %225 = vperm.xlu0 %224, %v219
      %v226 = vpop.permute.xlu0 %225
      %229 = vset.pattern.permute.xlu0 0
      %230 = vperm.xlu0 %229, %v220
      %v231 = vpop.permute.xlu0 %230
      %234 = vset.pattern.permute.xlu0 0
      %235 = vperm.xlu0 %234, %v221
      %v236 = vpop.permute.xlu0 %235
      %239 = vset.pattern.permute.xlu0 0
      %240 = vperm.xlu0 %239, %v222
      %v241 = vpop.permute.xlu0 %240
      %v247 = vunpack.c.l.b16 %v203
      %v248 = vunpack.c.l.b16 %v204
      %v249 = vunpack.c.l.b16 %v205
      %v250 = vunpack.c.l.b16 %v206
      %v251 = vpack.c.b16 %v248, %v247
      %v252 = vpack.c.b16 %v250, %v249
      %vm253 = vcmask 523264
      %v255 = vsel %vm253, %v251, 0
      %v258 = vsel %vm253, %v252, 0
      %260 = vmatprep.subr.bf16.mxu0 0
      %261 = vmatpush1.bf16.msra.mxu0 %v215
      %262 = vmatprep.subr.bf16.mxu0 0
      %263 = vmatpush1.bf16.msra.mxu0 %v216
      %264 = vmatprep.subr.bf16.mxu0 0
      %265 = vmatpush1.bf16.msra.mxu0 %v217
      %266 = vmatprep.subr.bf16.mxu0 0
      %267 = vmatpush1.bf16.msra.mxu0 %v218
      %268 = vmatprep.subr.bf16.mxu0 0
      %269 = vmatpush1.bf16.msra.mxu0 0
      %270 = vmatprep.subr.bf16.mxu0 0
      %271 = vmatpush1.bf16.msra.mxu0 0
      %272 = vmatprep.subr.bf16.mxu0 0
      %273 = vmatpush1.bf16.msra.mxu0 0
      %274 = vmatprep.subr.bf16.mxu0 0
      %275 = vmatpush1.bf16.msra.mxu0 0
      %276 = vmatprep.subr.bf16.mxu0 0
      %277 = vmatpush1.bf16.msra.mxu0 0
      %278 = vmatprep.subr.bf16.mxu0 0
      %279 = vmatpush1.bf16.msra.mxu0 0
      %280 = vmatprep.subr.bf16.mxu0 0
      %281 = vmatpush1.bf16.msra.mxu0 0
      %282 = vmatprep.subr.bf16.mxu0 0
      %283 = vmatpush1.bf16.msra.mxu0 0
      %284 = vmatprep.subr.bf16.mxu0 0
      %285 = vmatpush1.bf16.msra.mxu0 0
      %286 = vmatprep.subr.bf16.mxu0 0
      %287 = vmatpush1.bf16.msra.mxu0 0
      %288 = vmatprep.subr.bf16.mxu0 0
      %289 = vmatpush1.bf16.msra.mxu0 0
      %290 = vmatprep.subr.bf16.mxu0 0
      %291 = vmatpush1.bf16.msra.mxu0 0
      %292 = vmatprep.mubr.bf16.mxu0 0
      %293 = vmatmul.mubr.bf16.gmra.mrb[0].mxu0 %v255
      %v294 = vpop.f32.mrb[0].mxu0
      %v295 = vadd.f32 %v226, %v294
      %v296 = vpop.f32.mrb[0].mxu0
      %v297 = vpop.f32.mrb[0].mxu0
      %v298 = vadd.f32 %v231, %v297
      %v299 = vpop.f32.mrb[0].mxu0
      %300 = vmatprep.mubr.bf16.mxu0 0
      %301 = vmatmul.mubr.bf16.gmra.mrb[0].mxu0 %v258
      %v302 = vpop.f32.mrb[0].mxu0
      %v303 = vadd.f32 %v236, %v302
      %v304 = vpop.f32.mrb[0].mxu0
      %v305 = vpop.f32.mrb[0].mxu0
      %v306 = vadd.f32 %v241, %v305
      %v307 = vpop.f32.mrb[0].mxu0
      %308 = vdwg.mxu0
      %vm309 = vcmask 400384
      %310 = vst.msk [vmem:[%s201] sm:$0xff] %vm309, %v295
      %311 = vst.msk [vmem:[%s201 + $0x8] sm:$0xff] %vm309, %v298
      %312 = vst.msk [vmem:[%s201 + $0x10] sm:$0xff] %vm309, %v303
      %313 = vst.msk [vmem:[%s201 + $0x18] sm:$0xff] %vm309, %v306
      %p314 = scmp.lt.s32.totalorder %s18, 1
      %s315 = scalar_select %p314, %s18, 1
      %p316 = scmp.lt.s32.totalorder %s19, 0
      %s317 = scalar_select %p316, %s19, 0
      %s318 = smul.addr %s315, 4
      %s319 = sadd.s32 %s317, %s318
      %s320 = smul.addr %s319, 8
      %s321 = scalar_lea.vmem %s3, %s320
      // Predicated region
      $region33: #{forward.1} parent=31 // pred_check
        %p322 = pneg %p116
      $region34: #{forward.1} parent=31 // pred_check_branch
        %324 = sbr.rel (%p322) target = $region36
      $region35: #{forward.1} parent=31 // pred_region
        _
      $region36: #{forward.1} parent=31 // pred_fallthru
        _
    $region32: #{forward.1} parent=5 // pred_fallthru
      _
    %p325 = scmp.le.s32.totalorder 2, %s9
    // Predicated region
    $region37: #{forward.1} parent=5 // pred_check
      %p326 = pneg %p325
    $region38: #{forward.1} parent=5 // pred_check_branch
      %328 = sbr.rel (%p326) target = $region40
    $region39: #{forward.1} parent=5 // pred_region
      %s329 = ssub.s32 %s9, 2
      // Predicated region
      $region41: #{forward.1} parent=39 // pred_check
        %p330 = pneg %p122
      $region42: #{forward.1} parent=39 // pred_check_branch
        %332 = sbr.rel (%p330) target = $region44
      $region43: #{forward.1} parent=39 // pred_region
        %p333 = scmp.lt.s32.totalorder %s20, 1
        %s334 = scalar_select %p333, %s20, 1
        %p335 = scmp.lt.s32.totalorder %s21, 0
        %s336 = scalar_select %p335, %s21, 0
        %s337 = smul.addr %s334, 4
        %s338 = sadd.s32 %s336, %s337
        %s339 = smul.addr %s338, 8
        %s340 = scalar_lea.vmem %s3, %s339
      $region44: #{forward.1} parent=39 // pred_fallthru
        _
    $region40: #{forward.1} parent=5 // pred_fallthru
      _
  $region6: #{forward.1} parent=0 // loop_footer
    %s13 = sadd.s32 1, %s9
  $region7: #{forward.1} parent=0 // loop_footer_branch
    %8 = sbr.rel target = $region3
  $region8: #{forward.1} parent=0 // loop_exit
    _

</llo_original>
